<compile_context>
chip_gen: v6e
topology: v6e:2x2x1
jax: 0.10.0
libtpu: 0.0.40
codegen_flags: <defaults>
</compile_context>

<pallas_src>
import functools

import jax
import jax.numpy as jnp
from jax.experimental import pallas as pl
from jax.experimental.pallas import tpu as pltpu

EPS = 1e-5


def dense_gnn_kernel(x_ref, a_ref,
                     w0_ref, w1_ref, w2_ref, wl_ref,
                     vecs_ref, bl_ref,
                     o_ref, *, use_bf16_matmul):
    x = x_ref[...]                                   # (B, N, Cin) f32
    a = a_ref[...]                                   # (B, N, N)   f32
    _, N, _ = a.shape

    # --- DenseGCNConv adjacency preprocessing -------------------------------
    # Set diagonal to 1 with one select; keep only the UNnormalized adjacency
    # resident. The D^{-1/2} scaling is fused into the feature side.
    ii = jax.lax.broadcasted_iota(jnp.int32, (N, N), 0)
    jj = jax.lax.broadcasted_iota(jnp.int32, (N, N), 1)
    a1 = jnp.where(ii == jj, 1.0, a)                 # (B, N, N), diag = 1
    deg = jnp.sum(a1, axis=-1)                       # (B, N)
    dinv = jax.lax.rsqrt(jnp.maximum(deg, 1.0))[..., None]   # (B, N, 1), f32

    mm_dtype = jnp.bfloat16 if use_bf16_matmul else jnp.float32
    a_mm = a1.astype(mm_dtype)                       # 0/1 values: exact in bf16

    def gcn(h, w, b):
        # Feature transform as one tall (B*N, C) @ (C, H) GEMM.
        Bn, Nn, C = h.shape
        hw = jnp.dot(h.reshape(Bn * Nn, C).astype(mm_dtype),
                     w.astype(mm_dtype),
                     preferred_element_type=jnp.float32)
        hw = hw.reshape(Bn, Nn, -1)
        # D^{-1/2} A1 D^{-1/2} (h W)  ==  dinv * (A1 @ (dinv * (h W)))
        t = dinv * hw                                # f32 scaling
        agg = jnp.einsum('bnm,bmh->bnh', a_mm, t.astype(mm_dtype),
                         preferred_element_type=jnp.float32)
        return dinv * agg + b                        # (1, H) bias broadcasts

    def relu_bn(h, gamma, beta):
        # relu + training-mode BatchNorm1d over the flattened (B*N, H) batch.
        # Single sweep for mean and E[h^2]; one FMA pass with folded scale/shift.
        h = jnp.maximum(h, 0.0)
        inv_cnt = 1.0 / (h.shape[0] * h.shape[1])
        s1 = jnp.sum(h, axis=(0, 1))                 # (H,)
        s2 = jnp.sum(h * h, axis=(0, 1))             # (H,)
        mean = s1 * inv_cnt
        var = jnp.maximum(s2 * inv_cnt - mean * mean, 0.0)   # biased variance
        scale = gamma * jax.lax.rsqrt(var + EPS)     # (1, H)
        shift = beta - mean * scale                  # (1, H)
        return h * scale + shift

    # Packed per-channel vectors: rows = [b0, g0, be0, b1, g1, be1, b2].
    b0, g0, be0 = vecs_ref[0:1, :], vecs_ref[1:2, :], vecs_ref[2:3, :]
    b1, g1, be1 = vecs_ref[3:4, :], vecs_ref[4:5, :], vecs_ref[5:6, :]
    b2 = vecs_ref[6:7, :]

    h = relu_bn(gcn(x, w0_ref[...], b0), g0, be0)
    h = relu_bn(gcn(h, w1_ref[...], b1), g1, be1)
    h = gcn(h, w2_ref[...], b2)

    # Final Linear, folded to a single (B*N, H) @ (H, out) GEMM.
    Bn, Nn, H = h.shape
    out = jnp.dot(h.reshape(Bn * Nn, H).astype(mm_dtype),
                  wl_ref[...].astype(mm_dtype),
                  preferred_element_type=jnp.float32) + bl_ref[...]
    o_ref[...] = out.reshape(Bn, Nn, -1).astype(o_ref.dtype)


def dense_gnn_forward(x, a, params, *, use_bf16_matmul=False):
    """params: dict with w0,b0,g0,be0,w1,b1,g1,be1,w2,b2,wl,bl (vectors as (1,C))."""
    B, N, _ = x.shape
    out_channels = params['wl'].shape[1]

    # Pack the small per-channel vectors into one (7, H) array (one DMA).
    vecs = jnp.concatenate([params['b0'], params['g0'], params['be0'],
                            params['b1'], params['g1'], params['be1'],
                            params['b2']], axis=0)

    inputs = (x, a,
              params['w0'], params['w1'], params['w2'], params['wl'],
              vecs, params['bl'])

    vmem_spec = pl.BlockSpec(memory_space=pltpu.MemorySpace.VMEM)
    kernel = functools.partial(dense_gnn_kernel, use_bf16_matmul=use_bf16_matmul)
    return pl.pallas_call(
        kernel,
        out_shape=jax.ShapeDtypeStruct((B, N, out_channels), jnp.float32),
        in_specs=[vmem_spec] * len(inputs),
        out_specs=vmem_spec,
        compiler_params=pltpu.CompilerParams(vmem_limit_bytes=32 * 1024 * 1024),
    )(*inputs)


def dense_gnn_reference(x, a, params):
    """Pure-JAX reference replicating the PyTorch forward pass."""
    B, N, _ = a.shape
    eye = jnp.eye(N, dtype=jnp.float32)
    a = a * (1.0 - eye) + eye
    dinv = jax.lax.rsqrt(jnp.maximum(jnp.sum(a, axis=-1), 1.0))
    a_hat = dinv[:, :, None] * a * dinv[:, None, :]

    def gcn(h, w, b):
        return jnp.einsum('bnm,bmh->bnh', a_hat, h @ w) + b

    def relu_bn(h, g, be):
        h = jnp.maximum(h, 0.0)
        mean = jnp.mean(h, axis=(0, 1), keepdims=True)
        var = jnp.mean((h - mean) ** 2, axis=(0, 1), keepdims=True)
        return g * (h - mean) * jax.lax.rsqrt(var + EPS) + be

    h = relu_bn(gcn(x, params['w0'], params['b0']), params['g0'], params['be0'])
    h = relu_bn(gcn(h, params['w1'], params['b1']), params['g1'], params['be1'])
    h = gcn(h, params['w2'], params['b2'])
    return h @ params['wl'] + params['bl']


if __name__ == "__main__":
    B, N = 2, 16
    in_channels, hidden_channels, out_channels = 8, 32, 8

    key = jax.random.PRNGKey(0)
    keys = jax.random.split(key, 16)

    # Node features.
    x = jax.random.normal(keys[0], (B, N, in_channels), dtype=jnp.float32)
    # Random symmetric 0/1 adjacency (diagonal is overwritten to 1 in-kernel).
    a_rand = jax.random.uniform(keys[1], (B, N, N)) > 0.5
    a = jnp.maximum(a_rand, jnp.transpose(a_rand, (0, 2, 1))).astype(jnp.float32)

    def lin(k, fan_in, fan_out):
        bound = 1.0 / jnp.sqrt(fan_in)
        return jax.random.uniform(k, (fan_in, fan_out), minval=-bound, maxval=bound,
                                  dtype=jnp.float32)

    params = {
        # DenseGCNConv layer 0: in -> hidden
        'w0': lin(keys[2], in_channels, hidden_channels),
        'b0': jax.random.normal(keys[3], (1, hidden_channels), dtype=jnp.float32) * 0.1,
        'g0': jnp.ones((1, hidden_channels), jnp.float32),
        'be0': jnp.zeros((1, hidden_channels), jnp.float32),
        # DenseGCNConv layer 1: hidden -> hidden
        'w1': lin(keys[4], hidden_channels, hidden_channels),
        'b1': jax.random.normal(keys[5], (1, hidden_channels), dtype=jnp.float32) * 0.1,
        'g1': jnp.ones((1, hidden_channels), jnp.float32),
        'be1': jnp.zeros((1, hidden_channels), jnp.float32),
        # DenseGCNConv layer 2 (last, no bn/relu): hidden -> hidden
        'w2': lin(keys[6], hidden_channels, hidden_channels),
        'b2': jax.random.normal(keys[7], (1, hidden_channels), dtype=jnp.float32) * 0.1,
        # Final Linear: hidden -> out
        'wl': lin(keys[8], hidden_channels, out_channels),
        'bl': jax.random.normal(keys[9], (1, out_channels), dtype=jnp.float32) * 0.1,
    }

    ref = dense_gnn_reference(x, a, params)

    # f32 MXU path: tight correctness check.
    out = jax.block_until_ready(dense_gnn_forward(x, a, params))
    assert out.shape == (B, N, out_channels)
    assert jnp.allclose(out, ref, rtol=1e-4, atol=1e-4), "f32 kernel mismatch vs reference"

    # bf16-operand MXU path (f32 accumulate): looser tolerance for bf16 drift.
    out_bf16 = jax.block_until_ready(dense_gnn_forward(x, a, params, use_bf16_matmul=True))
    assert out_bf16.shape == (B, N, out_channels)
    assert jnp.allclose(out_bf16, ref, rtol=1e-1, atol=1e-1), "bf16 kernel mismatch vs reference"

    # TODO(synk): BatchNorm1d running-stat (momentum) updates are training
    # bookkeeping with no forward-output effect; only batch-stat normalization
    # is implemented. SAGE/GAT/MLP/GCN-GAT branches and skip/pred/mask paths
    # are not exercised by this configuration.
    print("KERNEL_OK")
</pallas_src>

<mosaic_0001>
module attributes {stable_mosaic.version = 11 : i64} {
  func.func @dense_gnn_kernel(%arg0: memref<2x16x8xf32, #tpu.memory_space<vmem>>, %arg1: memref<2x16x16xf32, #tpu.memory_space<vmem>>, %arg2: memref<8x32xf32, #tpu.memory_space<vmem>>, %arg3: memref<32x32xf32, #tpu.memory_space<vmem>>, %arg4: memref<32x32xf32, #tpu.memory_space<vmem>>, %arg5: memref<32x8xf32, #tpu.memory_space<vmem>>, %arg6: memref<7x32xf32, #tpu.memory_space<vmem>>, %arg7: memref<1x8xf32, #tpu.memory_space<vmem>>, %arg8: memref<2x16x8xf32, #tpu.memory_space<vmem>>) attributes {dimension_semantics = [], scalar_prefetch = 0 : i64, scratch_operands = 0 : i64, tpu.core_type = #tpu.core_type<tc>} {
    %c0 = arith.constant 0 : index
    %c0_0 = arith.constant 0 : index
    %c0_1 = arith.constant 0 : index
    %0 = vector.load %arg0[%c0, %c0_0, %c0_1] : memref<2x16x8xf32, #tpu.memory_space<vmem>>, vector<2x16x8xf32>
    %c0_2 = arith.constant 0 : index
    %c0_3 = arith.constant 0 : index
    %c0_4 = arith.constant 0 : index
    %1 = vector.load %arg1[%c0_2, %c0_3, %c0_4] : memref<2x16x16xf32, #tpu.memory_space<vmem>>, vector<2x16x16xf32>
    %2 = tpu.iota {dimensions = array<i32: 0>} : vector<16x16xi32>
    %3 = tpu.iota {dimensions = array<i32: 1>} : vector<16x16xi32>
    %4 = arith.cmpi eq, %2, %3 : vector<16x16xi32>
    %cst = arith.constant 1.000000e+00 : f32
    %5 = vector.shape_cast %4 : vector<16x16xi1> to vector<1x16x16xi1>
    %6 = vector.broadcast %5 : vector<1x16x16xi1> to vector<2x16x16xi1>
    %7 = vector.broadcast %cst : f32 to vector<2x16x16xf32>
    %8 = arith.select %6, %7, %1 : vector<2x16x16xi1>, vector<2x16x16xf32>
    %cst_5 = arith.constant dense<0.000000e+00> : vector<2x16xf32>
    %9 = vector.multi_reduction <add>, %8, %cst_5 [2] : vector<2x16x16xf32> to vector<2x16xf32>
    %cst_6 = arith.constant 1.000000e+00 : f32
    %10 = vector.broadcast %cst_6 : f32 to vector<2x16xf32>
    %11 = arith.maximumf %9, %10 : vector<2x16xf32>
    %12 = math.rsqrt %11 : vector<2x16xf32>
    %13 = vector.shape_cast %12 : vector<2x16xf32> to vector<2x16x1xf32>
    %c0_7 = arith.constant 0 : index
    %c0_8 = arith.constant 0 : index
    %14 = vector.load %arg6[%c0_7, %c0_8] : memref<7x32xf32, #tpu.memory_space<vmem>>, vector<1x32xf32>
    %c1 = arith.constant 1 : index
    %c0_9 = arith.constant 0 : index
    %15 = vector.load %arg6[%c1, %c0_9] : memref<7x32xf32, #tpu.memory_space<vmem>>, vector<1x32xf32>
    %c2 = arith.constant 2 : index
    %c0_10 = arith.constant 0 : index
    %16 = vector.load %arg6[%c2, %c0_10] : memref<7x32xf32, #tpu.memory_space<vmem>>, vector<1x32xf32>
    %c3 = arith.constant 3 : index
    %c0_11 = arith.constant 0 : index
    %17 = vector.load %arg6[%c3, %c0_11] : memref<7x32xf32, #tpu.memory_space<vmem>>, vector<1x32xf32>
    %c4 = arith.constant 4 : index
    %c0_12 = arith.constant 0 : index
    %18 = vector.load %arg6[%c4, %c0_12] : memref<7x32xf32, #tpu.memory_space<vmem>>, vector<1x32xf32>
    %c5 = arith.constant 5 : index
    %c0_13 = arith.constant 0 : index
    %19 = vector.load %arg6[%c5, %c0_13] : memref<7x32xf32, #tpu.memory_space<vmem>>, vector<1x32xf32>
    %c6 = arith.constant 6 : index
    %c0_14 = arith.constant 0 : index
    %20 = vector.load %arg6[%c6, %c0_14] : memref<7x32xf32, #tpu.memory_space<vmem>>, vector<1x32xf32>
    %c0_15 = arith.constant 0 : index
    %c0_16 = arith.constant 0 : index
    %21 = vector.load %arg2[%c0_15, %c0_16] : memref<8x32xf32, #tpu.memory_space<vmem>>, vector<8x32xf32>
    %22 = vector.shape_cast %0 : vector<2x16x8xf32> to vector<32x8xf32>
    %cst_17 = arith.constant dense<0.000000e+00> : vector<32x32xf32>
    %23 = tpu.matmul %22, %21, %cst_17 {dimension_numbers = #tpu.dot_dimension_numbers<[1], [0], [0], [1], [0, 0, 1, 1], [], []>} : vector<32x8xf32>, vector<8x32xf32>, vector<32x32xf32> -> vector<32x32xf32>
    %24 = vector.shape_cast %23 : vector<32x32xf32> to vector<2x16x32xf32>
    %25 = vector.broadcast %13 : vector<2x16x1xf32> to vector<2x16x32xf32>
    %26 = arith.mulf %25, %24 : vector<2x16x32xf32>
    "tpu.trace_start"() <{level = 10 : i32, message = "bnm,bmh->bnh"}> : () -> ()
    %cst_18 = arith.constant dense<0.000000e+00> : vector<2x16x32xf32>
    %27 = tpu.matmul %8, %26, %cst_18 {dimension_numbers = #tpu.dot_dimension_numbers<[2], [1], [1], [2], [0, 0, 0, 1, 1, 2], [0], [0]>} : vector<2x16x16xf32>, vector<2x16x32xf32>, vector<2x16x32xf32> -> vector<2x16x32xf32>
    "tpu.trace_stop"() : () -> ()
    %28 = vector.broadcast %13 : vector<2x16x1xf32> to vector<2x16x32xf32>
    %29 = arith.mulf %28, %27 : vector<2x16x32xf32>
    %30 = vector.shape_cast %14 : vector<1x32xf32> to vector<1x1x32xf32>
    %31 = vector.broadcast %30 : vector<1x1x32xf32> to vector<2x16x32xf32>
    %32 = arith.addf %29, %31 : vector<2x16x32xf32>
    %cst_19 = arith.constant 0.000000e+00 : f32
    %33 = vector.broadcast %cst_19 : f32 to vector<2x16x32xf32>
    %34 = arith.maximumf %32, %33 : vector<2x16x32xf32>
    %cst_20 = arith.constant dense<0.000000e+00> : vector<32xf32>
    %35 = vector.multi_reduction <add>, %34, %cst_20 [0, 1] : vector<2x16x32xf32> to vector<32xf32>
    %36 = arith.mulf %34, %34 : vector<2x16x32xf32>
    %cst_21 = arith.constant dense<0.000000e+00> : vector<32xf32>
    %37 = vector.multi_reduction <add>, %36, %cst_21 [0, 1] : vector<2x16x32xf32> to vector<32xf32>
    %cst_22 = arith.constant 3.125000e-02 : f32
    %38 = vector.broadcast %cst_22 : f32 to vector<32xf32>
    %39 = arith.mulf %35, %38 : vector<32xf32>
    %cst_23 = arith.constant 3.125000e-02 : f32
    %40 = vector.broadcast %cst_23 : f32 to vector<32xf32>
    %41 = arith.mulf %37, %40 : vector<32xf32>
    %42 = arith.mulf %39, %39 : vector<32xf32>
    %43 = arith.subf %41, %42 : vector<32xf32>
    %cst_24 = arith.constant 0.000000e+00 : f32
    %44 = vector.broadcast %cst_24 : f32 to vector<32xf32>
    %45 = arith.maximumf %43, %44 : vector<32xf32>
    %cst_25 = arith.constant 9.99999974E-6 : f32
    %46 = vector.broadcast %cst_25 : f32 to vector<32xf32>
    %47 = arith.addf %45, %46 : vector<32xf32>
    %48 = math.rsqrt %47 : vector<32xf32>
    %49 = vector.shape_cast %48 : vector<32xf32> to vector<1x32xf32>
    %50 = arith.mulf %15, %49 : vector<1x32xf32>
    %51 = vector.shape_cast %39 : vector<32xf32> to vector<1x32xf32>
    %52 = arith.mulf %51, %50 : vector<1x32xf32>
    %53 = arith.subf %16, %52 : vector<1x32xf32>
    %54 = vector.shape_cast %50 : vector<1x32xf32> to vector<1x1x32xf32>
    %55 = vector.broadcast %54 : vector<1x1x32xf32> to vector<2x16x32xf32>
    %56 = arith.mulf %34, %55 : vector<2x16x32xf32>
    %57 = vector.shape_cast %53 : vector<1x32xf32> to vector<1x1x32xf32>
    %58 = vector.broadcast %57 : vector<1x1x32xf32> to vector<2x16x32xf32>
    %59 = arith.addf %56, %58 : vector<2x16x32xf32>
    %c0_26 = arith.constant 0 : index
    %c0_27 = arith.constant 0 : index
    %60 = vector.load %arg3[%c0_26, %c0_27] : memref<32x32xf32, #tpu.memory_space<vmem>>, vector<32x32xf32>
    %61 = vector.shape_cast %59 : vector<2x16x32xf32> to vector<32x32xf32>
    %cst_28 = arith.constant dense<0.000000e+00> : vector<32x32xf32>
    %62 = tpu.matmul %61, %60, %cst_28 {dimension_numbers = #tpu.dot_dimension_numbers<[1], [0], [0], [1], [0, 0, 1, 1], [], []>} : vector<32x32xf32>, vector<32x32xf32>, vector<32x32xf32> -> vector<32x32xf32>
    %63 = vector.shape_cast %62 : vector<32x32xf32> to vector<2x16x32xf32>
    %64 = vector.broadcast %13 : vector<2x16x1xf32> to vector<2x16x32xf32>
    %65 = arith.mulf %64, %63 : vector<2x16x32xf32>
    "tpu.trace_start"() <{level = 10 : i32, message = "bnm,bmh->bnh"}> : () -> ()
    %cst_29 = arith.constant dense<0.000000e+00> : vector<2x16x32xf32>
    %66 = tpu.matmul %8, %65, %cst_29 {dimension_numbers = #tpu.dot_dimension_numbers<[2], [1], [1], [2], [0, 0, 0, 1, 1, 2], [0], [0]>} : vector<2x16x16xf32>, vector<2x16x32xf32>, vector<2x16x32xf32> -> vector<2x16x32xf32>
    "tpu.trace_stop"() : () -> ()
    %67 = vector.broadcast %13 : vector<2x16x1xf32> to vector<2x16x32xf32>
    %68 = arith.mulf %67, %66 : vector<2x16x32xf32>
    %69 = vector.shape_cast %17 : vector<1x32xf32> to vector<1x1x32xf32>
    %70 = vector.broadcast %69 : vector<1x1x32xf32> to vector<2x16x32xf32>
    %71 = arith.addf %68, %70 : vector<2x16x32xf32>
    %cst_30 = arith.constant 0.000000e+00 : f32
    %72 = vector.broadcast %cst_30 : f32 to vector<2x16x32xf32>
    %73 = arith.maximumf %71, %72 : vector<2x16x32xf32>
    %cst_31 = arith.constant dense<0.000000e+00> : vector<32xf32>
    %74 = vector.multi_reduction <add>, %73, %cst_31 [0, 1] : vector<2x16x32xf32> to vector<32xf32>
    %75 = arith.mulf %73, %73 : vector<2x16x32xf32>
    %cst_32 = arith.constant dense<0.000000e+00> : vector<32xf32>
    %76 = vector.multi_reduction <add>, %75, %cst_32 [0, 1] : vector<2x16x32xf32> to vector<32xf32>
    %cst_33 = arith.constant 3.125000e-02 : f32
    %77 = vector.broadcast %cst_33 : f32 to vector<32xf32>
    %78 = arith.mulf %74, %77 : vector<32xf32>
    %cst_34 = arith.constant 3.125000e-02 : f32
    %79 = vector.broadcast %cst_34 : f32 to vector<32xf32>
    %80 = arith.mulf %76, %79 : vector<32xf32>
    %81 = arith.mulf %78, %78 : vector<32xf32>
    %82 = arith.subf %80, %81 : vector<32xf32>
    %cst_35 = arith.constant 0.000000e+00 : f32
    %83 = vector.broadcast %cst_35 : f32 to vector<32xf32>
    %84 = arith.maximumf %82, %83 : vector<32xf32>
    %cst_36 = arith.constant 9.99999974E-6 : f32
    %85 = vector.broadcast %cst_36 : f32 to vector<32xf32>
    %86 = arith.addf %84, %85 : vector<32xf32>
    %87 = math.rsqrt %86 : vector<32xf32>
    %88 = vector.shape_cast %87 : vector<32xf32> to vector<1x32xf32>
    %89 = arith.mulf %18, %88 : vector<1x32xf32>
    %90 = vector.shape_cast %78 : vector<32xf32> to vector<1x32xf32>
    %91 = arith.mulf %90, %89 : vector<1x32xf32>
    %92 = arith.subf %19, %91 : vector<1x32xf32>
    %93 = vector.shape_cast %89 : vector<1x32xf32> to vector<1x1x32xf32>
    %94 = vector.broadcast %93 : vector<1x1x32xf32> to vector<2x16x32xf32>
    %95 = arith.mulf %73, %94 : vector<2x16x32xf32>
    %96 = vector.shape_cast %92 : vector<1x32xf32> to vector<1x1x32xf32>
    %97 = vector.broadcast %96 : vector<1x1x32xf32> to vector<2x16x32xf32>
    %98 = arith.addf %95, %97 : vector<2x16x32xf32>
    %c0_37 = arith.constant 0 : index
    %c0_38 = arith.constant 0 : index
    %99 = vector.load %arg4[%c0_37, %c0_38] : memref<32x32xf32, #tpu.memory_space<vmem>>, vector<32x32xf32>
    %100 = vector.shape_cast %98 : vector<2x16x32xf32> to vector<32x32xf32>
    %cst_39 = arith.constant dense<0.000000e+00> : vector<32x32xf32>
    %101 = tpu.matmul %100, %99, %cst_39 {dimension_numbers = #tpu.dot_dimension_numbers<[1], [0], [0], [1], [0, 0, 1, 1], [], []>} : vector<32x32xf32>, vector<32x32xf32>, vector<32x32xf32> -> vector<32x32xf32>
    %102 = vector.shape_cast %101 : vector<32x32xf32> to vector<2x16x32xf32>
    %103 = vector.broadcast %13 : vector<2x16x1xf32> to vector<2x16x32xf32>
    %104 = arith.mulf %103, %102 : vector<2x16x32xf32>
    "tpu.trace_start"() <{level = 10 : i32, message = "bnm,bmh->bnh"}> : () -> ()
    %cst_40 = arith.constant dense<0.000000e+00> : vector<2x16x32xf32>
    %105 = tpu.matmul %8, %104, %cst_40 {dimension_numbers = #tpu.dot_dimension_numbers<[2], [1], [1], [2], [0, 0, 0, 1, 1, 2], [0], [0]>} : vector<2x16x16xf32>, vector<2x16x32xf32>, vector<2x16x32xf32> -> vector<2x16x32xf32>
    "tpu.trace_stop"() : () -> ()
    %106 = vector.broadcast %13 : vector<2x16x1xf32> to vector<2x16x32xf32>
    %107 = arith.mulf %106, %105 : vector<2x16x32xf32>
    %108 = vector.shape_cast %20 : vector<1x32xf32> to vector<1x1x32xf32>
    %109 = vector.broadcast %108 : vector<1x1x32xf32> to vector<2x16x32xf32>
    %110 = arith.addf %107, %109 : vector<2x16x32xf32>
    %111 = vector.shape_cast %110 : vector<2x16x32xf32> to vector<32x32xf32>
    %c0_41 = arith.constant 0 : index
    %c0_42 = arith.constant 0 : index
    %112 = vector.load %arg5[%c0_41, %c0_42] : memref<32x8xf32, #tpu.memory_space<vmem>>, vector<32x8xf32>
    %cst_43 = arith.constant dense<0.000000e+00> : vector<32x8xf32>
    %113 = tpu.matmul %111, %112, %cst_43 {dimension_numbers = #tpu.dot_dimension_numbers<[1], [0], [0], [1], [0, 0, 1, 1], [], []>} : vector<32x32xf32>, vector<32x8xf32>, vector<32x8xf32> -> vector<32x8xf32>
    %c0_44 = arith.constant 0 : index
    %c0_45 = arith.constant 0 : index
    %114 = vector.load %arg7[%c0_44, %c0_45] : memref<1x8xf32, #tpu.memory_space<vmem>>, vector<1x8xf32>
    %115 = vector.broadcast %114 : vector<1x8xf32> to vector<32x8xf32>
    %116 = arith.addf %113, %115 : vector<32x8xf32>
    %117 = vector.shape_cast %116 : vector<32x8xf32> to vector<2x16x8xf32>
    %c0_46 = arith.constant 0 : index
    %c0_47 = arith.constant 0 : index
    %c0_48 = arith.constant 0 : index
    %118 = vector.load %arg8[%c0_46, %c0_47, %c0_48] : memref<2x16x8xf32, #tpu.memory_space<vmem>>, vector<2x16x8xf32>
    tpu.vector_store %arg8[%c0_46, %c0_47, %c0_48], %117 {strides = array<i32>} : memref<2x16x8xf32, #tpu.memory_space<vmem>>, vector<2x16x8xf32>,
    return
  }
}

</mosaic_0001>

<llo_original>
// kernel: tpu_custom_call.1
$region0: #{tpu_custom_call.1}
  #allocation0 [shape = 'u32[]', space=smem, size = 0x4, offset = 0x4, fixed_abs, tag = 'smem constant byte address 0x4 - core index']
  #allocation1 [shape = 'u32[144,128]{1,0:T(1,128)}', space=vmem, size = 0x12000, scoped, tag = 'internal scratch']
  %s0 = inlined_call_operand.vmem [shape: f32[2,16,8], index: 0, kind: input, shape index: {}]
  %s1 = inlined_call_operand.vmem [shape: f32[2,16,16], index: 1, kind: input, shape index: {}]
  %s2 = inlined_call_operand.vmem [shape: f32[8,32], index: 2, kind: input, shape index: {}]
  %s3 = inlined_call_operand.vmem [shape: f32[32,32], index: 3, kind: input, shape index: {}]
  %s4 = inlined_call_operand.hbm [shape: f32[32,32], index: 4, kind: input, shape index: {}]
  %s5 = inlined_call_operand.vmem [shape: f32[32,8], index: 5, kind: input, shape index: {}]
  %s6 = inlined_call_operand.vmem [shape: f32[7,32], index: 6, kind: input, shape index: {}]
  %s7 = inlined_call_operand.vmem [shape: f32[1,8], index: 7, kind: input, shape index: {}]
  %s8 = inlined_call_operand.vmem [shape: f32[2,16,8], index: 8, kind: output, shape index: {}]
  %s9 = sld [smem:[#allocation0]]
  $region46: #{tpu_custom_call.1} parent=0
    _
  %s11 = ssub.s32 1, %s9
  %s12 = scalar_select 0, %s11, %s9
  $region1: #{tpu_custom_call.1} parent=0
    #allocation2 [shape = 'u8[16384]{0}', space=vmem, size = 0x4000, scoped, tag = 'input window, operand 4, single buffered']
    #allocation3 [shape = 's32[1]{0}', space=sflag, size = 0x4, scoped, tag = 'scoped memory for tpu_custom_call.1']
    %13 = vsyncpa [#allocation3], 0
    // Predicated region
    $region2: #{tpu_custom_call.1} parent=1 // pred_check
      _
    $region3: #{tpu_custom_call.1} parent=1 // pred_check_branch
      %15 = sbr.rel (0) target = $region5
    $region4: #{tpu_custom_call.1} parent=1 // pred_region
      _
    $region5: #{tpu_custom_call.1} parent=1 // pred_fallthru
      _
    // Predicated region
    $region6: #{tpu_custom_call.1} parent=1 // pred_check
      _
    $region7: #{tpu_custom_call.1} parent=1 // pred_check_branch
      %17 = sbr.rel (0) target = $region9
    $region8: #{tpu_custom_call.1} parent=1 // pred_region
      _
    $region9: #{tpu_custom_call.1} parent=1 // pred_fallthru
      _
    // Predicated region
    $region10: #{tpu_custom_call.1} parent=1 // pred_check
      _
    $region11: #{tpu_custom_call.1} parent=1 // pred_check_branch
      %19 = sbr.rel (0) target = $region13
    $region12: #{tpu_custom_call.1} parent=1 // pred_region
      _
    $region13: #{tpu_custom_call.1} parent=1 // pred_fallthru
      _
    // Predicated region
    $region14: #{tpu_custom_call.1} parent=1 // pred_check
      _
    $region15: #{tpu_custom_call.1} parent=1 // pred_check_branch
      %21 = sbr.rel (0) target = $region17
    $region16: #{tpu_custom_call.1} parent=1 // pred_region
      _
    $region17: #{tpu_custom_call.1} parent=1 // pred_fallthru
      _
    // Predicated region
    $region18: #{tpu_custom_call.1} parent=1 // pred_check
      _
    $region19: #{tpu_custom_call.1} parent=1 // pred_check_branch
      %23 = sbr.rel (0) target = $region21
    $region20: #{tpu_custom_call.1} parent=1 // pred_region
      %s25 = ssub.s32 512, 512
      %26 = vsyncadd [#allocation3], %s25
      %s27 = sshll.u32 [#allocation2], 4
      %s28 = int_to_ptr.vmem [resolvable:$true] %s27
      %33 = dma.hbm_to_vmem [thread:$0]  %s4, 512, %s28, [#allocation3], 128, 128, 8
    $region21: #{tpu_custom_call.1} parent=1 // pred_fallthru
      _
    // Predicated region
    $region22: #{tpu_custom_call.1} parent=1 // pred_check
      _
    $region23: #{tpu_custom_call.1} parent=1 // pred_check_branch
      %35 = sbr.rel (0) target = $region25
    $region24: #{tpu_custom_call.1} parent=1 // pred_region
      _
    $region25: #{tpu_custom_call.1} parent=1 // pred_fallthru
      _
    // Predicated region
    $region26: #{tpu_custom_call.1} parent=1 // pred_check
      _
    $region27: #{tpu_custom_call.1} parent=1 // pred_check_branch
      %37 = sbr.rel (0) target = $region29
    $region28: #{tpu_custom_call.1} parent=1 // pred_region
      _
    $region29: #{tpu_custom_call.1} parent=1 // pred_fallthru
      _
    // Predicated region
    $region30: #{tpu_custom_call.1} parent=1 // pred_check
      _
    $region31: #{tpu_custom_call.1} parent=1 // pred_check_branch
      %39 = sbr.rel (0) target = $region33
    $region32: #{tpu_custom_call.1} parent=1 // pred_region
      _
    $region33: #{tpu_custom_call.1} parent=1 // pred_fallthru
      _
    // Predicated region
    $region34: #{tpu_custom_call.1} parent=1 // pred_check
      _
    $region35: #{tpu_custom_call.1} parent=1 // pred_check_branch
      %41 = sbr.rel (0) target = $region37
    $region36: #{tpu_custom_call.1} parent=1 // pred_region
      %42 = dma.done [#allocation3], 512
    $region37: #{tpu_custom_call.1} parent=1 // pred_fallthru
      _
    %v43 = vld [vmem:[%s0] sm:$0xff]
    %v44 = vld [vmem:[%s0 + $0x8] sm:$0xff]
    %v45 = vld [vmem:[%s0 + $0x10] sm:$0xff]
    %v46 = vld [vmem:[%s0 + $0x18] sm:$0xff]
    %v47 = vld [vmem:[%s1] sm:$0xff]
    %v48 = vld [vmem:[%s1 + $0x8] sm:$0xff]
    %v49 = vld [vmem:[%s1 + $0x10] sm:$0xff]
    %v50 = vld [vmem:[%s1 + $0x18] sm:$0xff]
    %v51 = vlaneseq
    %v52 = vshrl.u32 %v51, 7
    %v53 = vadd.s32 %v52, 8
    %v54 = vlaneseq
    %v55 = vand.u32 %v54, 127
    %vm56 = vcmp.eq.s32.totalorder %v52, %v55
    %vm57 = vcmp.eq.s32.totalorder %v53, %v55
    %v58 = vsel %vm56, 1, 0
    %v59 = vsel %vm57, 1, 0
    %vm60 = vcmp.eq.s32.totalorder %v58, 1
    %vm61 = vcmp.eq.s32.totalorder %v59, 1
    %v62 = vsel %vm60, 1.0, %v47
    %v63 = vsel %vm61, 1.0, %v48
    %v64 = vsel %vm60, 1.0, %v49
    %v65 = vsel %vm61, 1.0, %v50
    %vm66 = vcmask 130048
    %v67 = vsel %vm66, %v62, 0.0
    %68 = vadd.xlane.f32.xlu0 %v67
    %v69 = vpop.xlane.xlu0 %68
    %v70 = vsel %vm66, %v63, 0.0
    %71 = vadd.xlane.f32.xlu0 %v70
    %v72 = vpop.xlane.xlu0 %71
    %v73 = vsel %vm66, %v64, 0.0
    %74 = vadd.xlane.f32.xlu0 %v73
    %v75 = vpop.xlane.xlu0 %74
    %v76 = vsel %vm66, %v65, 0.0
    %77 = vadd.xlane.f32.xlu0 %v76
    %v78 = vpop.xlane.xlu0 %77
    %v79 = vmax.f32 %v69, 1.0
    %v80 = vmax.f32 %v72, 1.0
    %v81 = vmax.f32 %v75, 1.0
    %v82 = vmax.f32 %v78, 1.0
    %v83 = vrsqrt.pop %v79
    %v84 = vrsqrt.pop %v80
    %v85 = vrsqrt.pop %v81
    %v86 = vrsqrt.pop %v82
    %v87 = vld [vmem:[%s6] sm:$0x1]
    %v88 = vld [vmem:[%s6 + $0x1] sm:$0x1]
    %v89 = vld [vmem:[%s6 + $0x2] sm:$0x1]
    %v90 = vld [vmem:[%s6 + $0x3] sm:$0x1]
    %v91 = vld [vmem:[%s6 + $0x4] sm:$0x1]
    %v92 = vld [vmem:[%s6 + $0x5] sm:$0x1]
    %v93 = vld [vmem:[%s6 + $0x6] sm:$0x1]
    %v94 = vld [vmem:[%s2] sm:$0xff]
    %vm95 = vcmask 64512
    %v97 = vsel %vm95, %v43, 0
    %v100 = vsel %vm95, %v44, 0
    %v103 = vsel %vm95, %v45, 0
    %v106 = vsel %vm95, %v46, 0
    %108 = vmatprep.subr.mxu0 0.0
    %109 = vmatpush1.msra.mxu0 0.0
    %110 = vmatprep.subr.mxu0 0.0
    %111 = vmatpush1.msra.mxu0 0.0
    %112 = vmatprep.subr.mxu0 0.0
    %113 = vmatpush1.msra.mxu0 0.0
    %114 = vmatprep.subr.mxu0 0.0
    %115 = vmatpush1.msra.mxu0 0.0
    %116 = vmatprep.subr.mxu0 0.0
    %117 = vmatpush1.msra.mxu0 0.0
    %118 = vmatprep.subr.mxu0 0.0
    %119 = vmatpush1.msra.mxu0 0.0
    %120 = vmatprep.subr.mxu0 0.0
    %121 = vmatpush1.msra.mxu0 0.0
    %122 = vmatprep.subr.mxu0 0.0
    %123 = vmatpush1.msra.mxu0 0.0
    %124 = vmatprep.subr.mxu0 0.0
    %125 = vmatpush1.msra.mxu0 0.0
    %126 = vmatprep.subr.mxu0 0.0
    %127 = vmatpush1.msra.mxu0 0.0
    %128 = vmatprep.subr.mxu0 0.0
    %129 = vmatpush1.msra.mxu0 0.0
    %130 = vmatprep.subr.mxu0 0.0
    %131 = vmatpush1.msra.mxu0 0.0
    %132 = vmatprep.subr.mxu0 0.0
    %133 = vmatpush1.msra.mxu0 0.0
    %134 = vmatprep.subr.mxu0 0.0
    %135 = vmatpush1.msra.mxu0 0.0
    %136 = vmatprep.subr.mxu0 0.0
    %137 = vmatpush1.msra.mxu0 0.0
    %138 = vmatprep.subr.mxu0 0.0
    %139 = vmatpush1.msra.mxu0 %v94
    %140 = vmatprep.subr.mxu0 0.0
    %141 = vmatpush2.msra.mxu0 0.0
    %142 = vmatprep.subr.mxu0 0.0
    %143 = vmatpush2.msra.mxu0 0.0
    %144 = vmatprep.subr.mxu0 0.0
    %145 = vmatpush2.msra.mxu0 0.0
    %146 = vmatprep.subr.mxu0 0.0
    %147 = vmatpush2.msra.mxu0 0.0
    %148 = vmatprep.subr.mxu0 0.0
    %149 = vmatpush2.msra.mxu0 0.0
    %150 = vmatprep.subr.mxu0 0.0
    %151 = vmatpush2.msra.mxu0 0.0
    %152 = vmatprep.subr.mxu0 0.0
    %153 = vmatpush2.msra.mxu0 0.0
    %154 = vmatprep.subr.mxu0 0.0
    %155 = vmatpush2.msra.mxu0 0.0
    %156 = vmatprep.subr.mxu0 0.0
    %157 = vmatpush2.msra.mxu0 0.0
    %158 = vmatprep.subr.mxu0 0.0
    %159 = vmatpush2.msra.mxu0 0.0
    %160 = vmatprep.subr.mxu0 0.0
    %161 = vmatpush2.msra.mxu0 0.0
    %162 = vmatprep.subr.mxu0 0.0
    %163 = vmatpush2.msra.mxu0 0.0
    %164 = vmatprep.subr.mxu0 0.0
    %165 = vmatpush2.msra.mxu0 0.0
    %166 = vmatprep.subr.mxu0 0.0
    %167 = vmatpush2.msra.mxu0 0.0
    %168 = vmatprep.subr.mxu0 0.0
    %169 = vmatpush2.msra.mxu0 0.0
    %170 = vmatprep.subr.mxu0 0.0
    %171 = vmatpush2.msra.mxu0 0.0
    %172 = vmatprep.mubr.f32.mxu0 0.0
    %173 = vmatmul.mubr.f32.gmra.mxu0 %v97
    %v174 = vpop.f32.mrf.mxu0
    %v175 = vadd.f32 0.0, %v174
    %v176 = vpop.f32.mrf.mxu0
    %177 = vmatprep.mubr.f32.mxu0 0.0
    %178 = vmatmul.mubr.f32.gmra.mxu0 %v100
    %v179 = vpop.f32.mrf.mxu0
    %v180 = vadd.f32 0.0, %v179
    %v181 = vpop.f32.mrf.mxu0
    %182 = vmatprep.mubr.f32.mxu0 0.0
    %183 = vmatmul.mubr.f32.gmra.mxu0 %v103
    %v184 = vpop.f32.mrf.mxu0
    %v185 = vadd.f32 0.0, %v184
    %v186 = vpop.f32.mrf.mxu0
    %187 = vmatprep.mubr.f32.mxu0 0.0
    %188 = vmatmul.mubr.f32.gmra.mxu0 %v106
    %v189 = vpop.f32.mrf.mxu0
    %v190 = vadd.f32 0.0, %v189
    %v191 = vpop.f32.mrf.mxu0
    %192 = vdwg.mxu0
    %v193 = vmul.f32 %v83, %v175
    %v194 = vmul.f32 %v84, %v180
    %v195 = vmul.f32 %v85, %v185
    %v196 = vmul.f32 %v86, %v190
    %v198 = vsel %vm66, %v62, 0
    %v201 = vsel %vm66, %v63, 0
    %203 = vmatprep.subr.mxu0 0.0
    %204 = vmatpush1.msra.mxu0 0.0
    %205 = vmatprep.subr.mxu0 0.0
    %206 = vmatpush1.msra.mxu0 0.0
    %207 = vmatprep.subr.mxu0 0.0
    %208 = vmatpush1.msra.mxu0 0.0
    %209 = vmatprep.subr.mxu0 0.0
    %210 = vmatpush1.msra.mxu0 0.0
    %211 = vmatprep.subr.mxu0 0.0
    %212 = vmatpush1.msra.mxu0 0.0
    %213 = vmatprep.subr.mxu0 0.0
    %214 = vmatpush1.msra.mxu0 0.0
    %215 = vmatprep.subr.mxu0 0.0
    %216 = vmatpush1.msra.mxu0 0.0
    %217 = vmatprep.subr.mxu0 0.0
    %218 = vmatpush1.msra.mxu0 0.0
    %219 = vmatprep.subr.mxu0 0.0
    %220 = vmatpush1.msra.mxu0 0.0
    %221 = vmatprep.subr.mxu0 0.0
    %222 = vmatpush1.msra.mxu0 0.0
    %223 = vmatprep.subr.mxu0 0.0
    %224 = vmatpush1.msra.mxu0 0.0
    %225 = vmatprep.subr.mxu0 0.0
    %226 = vmatpush1.msra.mxu0 0.0
    %227 = vmatprep.subr.mxu0 0.0
    %228 = vmatpush1.msra.mxu0 0.0
    %229 = vmatprep.subr.mxu0 0.0
    %230 = vmatpush1.msra.mxu0 0.0
    %231 = vmatprep.subr.mxu0 0.0
    %232 = vmatpush1.msra.mxu0 %v194
    %233 = vmatprep.subr.mxu0 0.0
    %234 = vmatpush1.msra.mxu0 %v193
    %235 = vmatprep.subr.mxu0 0.0
    %236 = vmatpush2.msra.mxu0 0.0
    %237 = vmatprep.subr.mxu0 0.0
    %238 = vmatpush2.msra.mxu0 0.0
    %239 = vmatprep.subr.mxu0 0.0
    %240 = vmatpush2.msra.mxu0 0.0
    %241 = vmatprep.subr.mxu0 0.0
    %242 = vmatpush2.msra.mxu0 0.0
    %243 = vmatprep.subr.mxu0 0.0
    %244 = vmatpush2.msra.mxu0 0.0
    %245 = vmatprep.subr.mxu0 0.0
    %246 = vmatpush2.msra.mxu0 0.0
    %247 = vmatprep.subr.mxu0 0.0
    %248 = vmatpush2.msra.mxu0 0.0
    %249 = vmatprep.subr.mxu0 0.0
    %250 = vmatpush2.msra.mxu0 0.0
    %251 = vmatprep.subr.mxu0 0.0
    %252 = vmatpush2.msra.mxu0 0.0
    %253 = vmatprep.subr.mxu0 0.0
    %254 = vmatpush2.msra.mxu0 0.0
    %255 = vmatprep.subr.mxu0 0.0
    %256 = vmatpush2.msra.mxu0 0.0
    %257 = vmatprep.subr.mxu0 0.0
    %258 = vmatpush2.msra.mxu0 0.0
    %259 = vmatprep.subr.mxu0 0.0
    %260 = vmatpush2.msra.mxu0 0.0
    %261 = vmatprep.subr.mxu0 0.0
    %262 = vmatpush2.msra.mxu0 0.0
    %263 = vmatprep.subr.mxu0 0.0
    %264 = vmatpush2.msra.mxu0 0.0
    %265 = vmatprep.subr.mxu0 0.0
    %266 = vmatpush2.msra.mxu0 0.0
    %267 = vmatprep.mubr.f32.mxu0 0.0
    %268 = vmatmul.mubr.f32.gmra.mxu0 %v198
    %v269 = vpop.f32.mrf.mxu0
    %v270 = vadd.f32 0.0, %v269
    %v271 = vpop.f32.mrf.mxu0
    %272 = vmatprep.mubr.f32.mxu0 0.0
    %273 = vmatmul.mubr.f32.gmra.mxu0 %v201
    %v274 = vpop.f32.mrf.mxu0
    %v275 = vadd.f32 0.0, %v274
    %v276 = vpop.f32.mrf.mxu0
    %277 = vdwg.mxu0
    %v279 = vsel %vm66, %v64, 0
    %v282 = vsel %vm66, %v65, 0
    %284 = vmatprep.subr.mxu0 0.0
    %285 = vmatpush1.msra.mxu0 0.0
    %286 = vmatprep.subr.mxu0 0.0
    %287 = vmatpush1.msra.mxu0 0.0
    %288 = vmatprep.subr.mxu0 0.0
    %289 = vmatpush1.msra.mxu0 0.0
    %290 = vmatprep.subr.mxu0 0.0
    %291 = vmatpush1.msra.mxu0 0.0
    %292 = vmatprep.subr.mxu0 0.0
    %293 = vmatpush1.msra.mxu0 0.0
    %294 = vmatprep.subr.mxu0 0.0
    %295 = vmatpush1.msra.mxu0 0.0
    %296 = vmatprep.subr.mxu0 0.0
    %297 = vmatpush1.msra.mxu0 0.0
    %298 = vmatprep.subr.mxu0 0.0
    %299 = vmatpush1.msra.mxu0 0.0
    %300 = vmatprep.subr.mxu0 0.0
    %301 = vmatpush1.msra.mxu0 0.0
    %302 = vmatprep.subr.mxu0 0.0
    %303 = vmatpush1.msra.mxu0 0.0
    %304 = vmatprep.subr.mxu0 0.0
    %305 = vmatpush1.msra.mxu0 0.0
    %306 = vmatprep.subr.mxu0 0.0
    %307 = vmatpush1.msra.mxu0 0.0
    %308 = vmatprep.subr.mxu0 0.0
    %309 = vmatpush1.msra.mxu0 0.0
    %310 = vmatprep.subr.mxu0 0.0
    %311 = vmatpush1.msra.mxu0 0.0
    %312 = vmatprep.subr.mxu0 0.0
    %313 = vmatpush1.msra.mxu0 %v196
    %314 = vmatprep.subr.mxu0 0.0
    %315 = vmatpush1.msra.mxu0 %v195
    %316 = vmatprep.subr.mxu0 0.0
    %317 = vmatpush2.msra.mxu0 0.0
    %318 = vmatprep.subr.mxu0 0.0
    %319 = vmatpush2.msra.mxu0 0.0
    %320 = vmatprep.subr.mxu0 0.0
    %321 = vmatpush2.msra.mxu0 0.0
    %322 = vmatprep.subr.mxu0 0.0
    %323 = vmatpush2.msra.mxu0 0.0
    %324 = vmatprep.subr.mxu0 0.0
    %325 = vmatpush2.msra.mxu0 0.0
    %326 = vmatprep.subr.mxu0 0.0
    %327 = vmatpush2.msra.mxu0 0.0
    %328 = vmatprep.subr.mxu0 0.0
    %329 = vmatpush2.msra.mxu0 0.0
    %330 = vmatprep.subr.mxu0 0.0
    %331 = vmatpush2.msra.mxu0 0.0
    %332 = vmatprep.subr.mxu0 0.0
    %333 = vmatpush2.msra.mxu0 0.0
    %334 = vmatprep.subr.mxu0 0.0
    %335 = vmatpush2.msra.mxu0 0.0
    %336 = vmatprep.subr.mxu0 0.0
    %337 = vmatpush2.msra.mxu0 0.0
    %338 = vmatprep.subr.mxu0 0.0
    %339 = vmatpush2.msra.mxu0 0.0
    %340 = vmatprep.subr.mxu0 0.0
    %341 = vmatpush2.msra.mxu0 0.0
    %342 = vmatprep.subr.mxu0 0.0
    %343 = vmatpush2.msra.mxu0 0.0
    %344 = vmatprep.subr.mxu0 0.0
    %345 = vmatpush2.msra.mxu0 0.0
    %346 = vmatprep.subr.mxu0 0.0
    %347 = vmatpush2.msra.mxu0 0.0
    %348 = vmatprep.mubr.f32.mxu0 0.0
    %349 = vmatmul.mubr.f32.gmra.mxu0 %v279
    %v350 = vpop.f32.mrf.mxu0
    %v351 = vadd.f32 0.0, %v350
    %v352 = vpop.f32.mrf.mxu0
    %353 = vmatprep.mubr.f32.mxu0 0.0
    %354 = vmatmul.mubr.f32.gmra.mxu0 %v282
    %v355 = vpop.f32.mrf.mxu0
    %v356 = vadd.f32 0.0, %v355
    %v357 = vpop.f32.mrf.mxu0
    %358 = vdwg.mxu0
    %v359 = vmul.f32 %v83, %v270
    %v360 = vmul.f32 %v84, %v275
    %v361 = vmul.f32 %v85, %v351
    %v362 = vmul.f32 %v86, %v356
    %v363 = vlaneseq
    %v364 = vshrl.u32 %v363, 7
    %v365 = vsub.s32 0, %v364
    %v366 = vrot.slane %v87, %v365
    %v367 = vadd.f32 %v359, %v366
    %v368 = vadd.f32 %v360, %v366
    %v369 = vadd.f32 %v361, %v366
    %v370 = vadd.f32 %v362, %v366
    %v371 = vmax.f32 %v367, 0.0
    %v372 = vmax.f32 %v368, 0.0
    %v373 = vmax.f32 %v369, 0.0
    %v374 = vmax.f32 %v370, 0.0
    %vm375 = vcmask 261120
    %v376 = vsel %vm375, %v371, 0.0
    %v377 = vsel %vm375, %v372, 0.0
    %v378 = vadd.f32 %v376, %v377
    %v379 = vsel %vm375, %v373, 0.0
    %v380 = vadd.f32 %v378, %v379
    %v381 = vsel %vm375, %v374, 0.0
    %v382 = vadd.f32 %v380, %v381
    %v383 = vrot.slane %v382, 4
    %v384 = vadd.f32 %v382, %v383
    %v385 = vrot.slane %v384, 2
    %v386 = vadd.f32 %v384, %v385
    %v387 = vrot.slane %v386, 1
    %v388 = vadd.f32 %v386, %v387
    %v389 = vmul.f32 %v371, %v371
    %v390 = vmul.f32 %v372, %v372
    %v391 = vmul.f32 %v373, %v373
    %v392 = vmul.f32 %v374, %v374
    %v393 = vsel %vm375, %v389, 0.0
    %v394 = vsel %vm375, %v390, 0.0
    %v395 = vadd.f32 %v393, %v394
    %v396 = vsel %vm375, %v391, 0.0
    %v397 = vadd.f32 %v395, %v396
    %v398 = vsel %vm375, %v392, 0.0
    %v399 = vadd.f32 %v397, %v398
    %v400 = vrot.slane %v399, 4
    %v401 = vadd.f32 %v399, %v400
    %v402 = vrot.slane %v401, 2
    %v403 = vadd.f32 %v401, %v402
    %v404 = vrot.slane %v403, 1
    %v405 = vadd.f32 %v403, %v404
    %v406 = vmul.f32 %v388, 0.03125
    %v407 = vmul.f32 %v405, 0.03125
    %v408 = vmul.f32 %v406, %v406
    %v409 = vsub.f32 %v407, %v408
    %v410 = vmax.f32 %v409, 0.0
    %v411 = vadd.f32 %v410, 1e-05
    %v412 = vrsqrt.pop %v411
    %v413 = vmul.f32 %v88, %v412
    %v414 = vmul.f32 %v406, %v413
    %v415 = vsub.f32 %v89, %v414
    %v416 = vlaneseq
    %v417 = vshrl.u32 %v416, 7
    %v418 = vsub.s32 0, %v417
    %v419 = vrot.slane %v413, %v418
    %v420 = vmul.f32 %v371, %v419
    %v421 = vmul.f32 %v372, %v419
    %v422 = vmul.f32 %v373, %v419
    %v423 = vmul.f32 %v374, %v419
    %v424 = vlaneseq
    %v425 = vshrl.u32 %v424, 7
    %v426 = vsub.s32 0, %v425
    %v427 = vrot.slane %v415, %v426
    %v428 = vadd.f32 %v420, %v427
    %v429 = vadd.f32 %v421, %v427
    %v430 = vadd.f32 %v422, %v427
    %v431 = vadd.f32 %v423, %v427
    %v432 = vld [vmem:[%s3] sm:$0xff]
    %v433 = vld [vmem:[%s3 + $0x8] sm:$0xff]
    %v434 = vld [vmem:[%s3 + $0x10] sm:$0xff]
    %v435 = vld [vmem:[%s3 + $0x18] sm:$0xff]
    %v437 = vsel %vm375, %v428, 0
    %v440 = vsel %vm375, %v429, 0
    %v443 = vsel %vm375, %v430, 0
    %v446 = vsel %vm375, %v431, 0
    %448 = vmatprep.subr.mxu0 0.0
    %449 = vmatpush1.msra.mxu0 0.0
    %450 = vmatprep.subr.mxu0 0.0
    %451 = vmatpush1.msra.mxu0 0.0
    %452 = vmatprep.subr.mxu0 0.0
    %453 = vmatpush1.msra.mxu0 0.0
    %454 = vmatprep.subr.mxu0 0.0
    %455 = vmatpush1.msra.mxu0 0.0
    %456 = vmatprep.subr.mxu0 0.0
    %457 = vmatpush1.msra.mxu0 0.0
    %458 = vmatprep.subr.mxu0 0.0
    %459 = vmatpush1.msra.mxu0 0.0
    %460 = vmatprep.subr.mxu0 0.0
    %461 = vmatpush1.msra.mxu0 0.0
    %462 = vmatprep.subr.mxu0 0.0
    %463 = vmatpush1.msra.mxu0 0.0
    %464 = vmatprep.subr.mxu0 0.0
    %465 = vmatpush1.msra.mxu0 0.0
    %466 = vmatprep.subr.mxu0 0.0
    %467 = vmatpush1.msra.mxu0 0.0
    %468 = vmatprep.subr.mxu0 0.0
    %469 = vmatpush1.msra.mxu0 0.0
    %470 = vmatprep.subr.mxu0 0.0
    %471 = vmatpush1.msra.mxu0 0.0
    %472 = vmatprep.subr.mxu0 0.0
    %473 = vmatpush1.msra.mxu0 %v435
    %474 = vmatprep.subr.mxu0 0.0
    %475 = vmatpush1.msra.mxu0 %v434
    %476 = vmatprep.subr.mxu0 0.0
    %477 = vmatpush1.msra.mxu0 %v433
    %478 = vmatprep.subr.mxu0 0.0
    %479 = vmatpush1.msra.mxu0 %v432
    %480 = vmatprep.subr.mxu0 0.0
    %481 = vmatpush2.msra.mxu0 0.0
    %482 = vmatprep.subr.mxu0 0.0
    %483 = vmatpush2.msra.mxu0 0.0
    %484 = vmatprep.subr.mxu0 0.0
    %485 = vmatpush2.msra.mxu0 0.0
    %486 = vmatprep.subr.mxu0 0.0
    %487 = vmatpush2.msra.mxu0 0.0
    %488 = vmatprep.subr.mxu0 0.0
    %489 = vmatpush2.msra.mxu0 0.0
    %490 = vmatprep.subr.mxu0 0.0
    %491 = vmatpush2.msra.mxu0 0.0
    %492 = vmatprep.subr.mxu0 0.0
    %493 = vmatpush2.msra.mxu0 0.0
    %494 = vmatprep.subr.mxu0 0.0
    %495 = vmatpush2.msra.mxu0 0.0
    %496 = vmatprep.subr.mxu0 0.0
    %497 = vmatpush2.msra.mxu0 0.0
    %498 = vmatprep.subr.mxu0 0.0
    %499 = vmatpush2.msra.mxu0 0.0
    %500 = vmatprep.subr.mxu0 0.0
    %501 = vmatpush2.msra.mxu0 0.0
    %502 = vmatprep.subr.mxu0 0.0
    %503 = vmatpush2.msra.mxu0 0.0
    %504 = vmatprep.subr.mxu0 0.0
    %505 = vmatpush2.msra.mxu0 0.0
    %506 = vmatprep.subr.mxu0 0.0
    %507 = vmatpush2.msra.mxu0 0.0
    %508 = vmatprep.subr.mxu0 0.0
    %509 = vmatpush2.msra.mxu0 0.0
    %510 = vmatprep.subr.mxu0 0.0
    %511 = vmatpush2.msra.mxu0 0.0
    %512 = vmatprep.mubr.f32.mxu0 0.0
    %513 = vmatmul.mubr.f32.gmra.mxu0 %v437
    %v514 = vpop.f32.mrf.mxu0
    %v515 = vadd.f32 0.0, %v514
    %v516 = vpop.f32.mrf.mxu0
    %517 = vmatprep.mubr.f32.mxu0 0.0
    %518 = vmatmul.mubr.f32.gmra.mxu0 %v440
    %v519 = vpop.f32.mrf.mxu0
    %v520 = vadd.f32 0.0, %v519
    %v521 = vpop.f32.mrf.mxu0
    %522 = vmatprep.mubr.f32.mxu0 0.0
    %523 = vmatmul.mubr.f32.gmra.mxu0 %v443
    %v524 = vpop.f32.mrf.mxu0
    %v525 = vadd.f32 0.0, %v524
    %v526 = vpop.f32.mrf.mxu0
    %527 = vmatprep.mubr.f32.mxu0 0.0
    %528 = vmatmul.mubr.f32.gmra.mxu0 %v446
    %v529 = vpop.f32.mrf.mxu0
    %v530 = vadd.f32 0.0, %v529
    %v531 = vpop.f32.mrf.mxu0
    %532 = vdwg.mxu0
    %v533 = vmul.f32 %v83, %v515
    %v534 = vmul.f32 %v84, %v520
    %v535 = vmul.f32 %v85, %v525
    %v536 = vmul.f32 %v86, %v530
    %537 = vmatprep.subr.mxu0 0.0
    %538 = vmatpush1.msra.mxu0 0.0
    %539 = vmatprep.subr.mxu0 0.0
    %540 = vmatpush1.msra.mxu0 0.0
    %541 = vmatprep.subr.mxu0 0.0
    %542 = vmatpush1.msra.mxu0 0.0
    %543 = vmatprep.subr.mxu0 0.0
    %544 = vmatpush1.msra.mxu0 0.0
    %545 = vmatprep.subr.mxu0 0.0
    %546 = vmatpush1.msra.mxu0 0.0
    %547 = vmatprep.subr.mxu0 0.0
    %548 = vmatpush1.msra.mxu0 0.0
    %549 = vmatprep.subr.mxu0 0.0
    %550 = vmatpush1.msra.mxu0 0.0
    %551 = vmatprep.subr.mxu0 0.0
    %552 = vmatpush1.msra.mxu0 0.0
    %553 = vmatprep.subr.mxu0 0.0
    %554 = vmatpush1.msra.mxu0 0.0
    %555 = vmatprep.subr.mxu0 0.0
    %556 = vmatpush1.msra.mxu0 0.0
    %557 = vmatprep.subr.mxu0 0.0
    %558 = vmatpush1.msra.mxu0 0.0
    %559 = vmatprep.subr.mxu0 0.0
    %560 = vmatpush1.msra.mxu0 0.0
    %561 = vmatprep.subr.mxu0 0.0
    %562 = vmatpush1.msra.mxu0 0.0
    %563 = vmatprep.subr.mxu0 0.0
    %564 = vmatpush1.msra.mxu0 0.0
    %565 = vmatprep.subr.mxu0 0.0
    %566 = vmatpush1.msra.mxu0 %v534
    %567 = vmatprep.subr.mxu0 0.0
    %568 = vmatpush1.msra.mxu0 %v533
    %569 = vmatprep.subr.mxu0 0.0
    %570 = vmatpush2.msra.mxu0 0.0
    %571 = vmatprep.subr.mxu0 0.0
    %572 = vmatpush2.msra.mxu0 0.0
    %573 = vmatprep.subr.mxu0 0.0
    %574 = vmatpush2.msra.mxu0 0.0
    %575 = vmatprep.subr.mxu0 0.0
    %576 = vmatpush2.msra.mxu0 0.0
    %577 = vmatprep.subr.mxu0 0.0
    %578 = vmatpush2.msra.mxu0 0.0
    %579 = vmatprep.subr.mxu0 0.0
    %580 = vmatpush2.msra.mxu0 0.0
    %581 = vmatprep.subr.mxu0 0.0
    %582 = vmatpush2.msra.mxu0 0.0
    %583 = vmatprep.subr.mxu0 0.0
    %584 = vmatpush2.msra.mxu0 0.0
    %585 = vmatprep.subr.mxu0 0.0
    %586 = vmatpush2.msra.mxu0 0.0
    %587 = vmatprep.subr.mxu0 0.0
    %588 = vmatpush2.msra.mxu0 0.0
    %589 = vmatprep.subr.mxu0 0.0
    %590 = vmatpush2.msra.mxu0 0.0
    %591 = vmatprep.subr.mxu0 0.0
    %592 = vmatpush2.msra.mxu0 0.0
    %593 = vmatprep.subr.mxu0 0.0
    %594 = vmatpush2.msra.mxu0 0.0
    %595 = vmatprep.subr.mxu0 0.0
    %596 = vmatpush2.msra.mxu0 0.0
    %597 = vmatprep.subr.mxu0 0.0
    %598 = vmatpush2.msra.mxu0 0.0
    %599 = vmatprep.subr.mxu0 0.0
    %600 = vmatpush2.msra.mxu0 0.0
    %601 = vmatprep.mubr.f32.mxu0 0.0
    %602 = vmatmul.mubr.f32.gmra.mxu0 %v198
    %v603 = vpop.f32.mrf.mxu0
    %v604 = vadd.f32 0.0, %v603
    %v605 = vpop.f32.mrf.mxu0
    %606 = vmatprep.mubr.f32.mxu0 0.0
    %607 = vmatmul.mubr.f32.gmra.mxu0 %v201
    %v608 = vpop.f32.mrf.mxu0
    %v609 = vadd.f32 0.0, %v608
    %v610 = vpop.f32.mrf.mxu0
    %611 = vdwg.mxu0
    %612 = vmatprep.subr.mxu0 0.0
    %613 = vmatpush1.msra.mxu0 0.0
    %614 = vmatprep.subr.mxu0 0.0
    %615 = vmatpush1.msra.mxu0 0.0
    %616 = vmatprep.subr.mxu0 0.0
    %617 = vmatpush1.msra.mxu0 0.0
    %618 = vmatprep.subr.mxu0 0.0
    %619 = vmatpush1.msra.mxu0 0.0
    %620 = vmatprep.subr.mxu0 0.0
    %621 = vmatpush1.msra.mxu0 0.0
    %622 = vmatprep.subr.mxu0 0.0
    %623 = vmatpush1.msra.mxu0 0.0
    %624 = vmatprep.subr.mxu0 0.0
    %625 = vmatpush1.msra.mxu0 0.0
    %626 = vmatprep.subr.mxu0 0.0
    %627 = vmatpush1.msra.mxu0 0.0
    %628 = vmatprep.subr.mxu0 0.0
    %629 = vmatpush1.msra.mxu0 0.0
    %630 = vmatprep.subr.mxu0 0.0
    %631 = vmatpush1.msra.mxu0 0.0
    %632 = vmatprep.subr.mxu0 0.0
    %633 = vmatpush1.msra.mxu0 0.0
    %634 = vmatprep.subr.mxu0 0.0
    %635 = vmatpush1.msra.mxu0 0.0
    %636 = vmatprep.subr.mxu0 0.0
    %637 = vmatpush1.msra.mxu0 0.0
    %638 = vmatprep.subr.mxu0 0.0
    %639 = vmatpush1.msra.mxu0 0.0
    %640 = vmatprep.subr.mxu0 0.0
    %641 = vmatpush1.msra.mxu0 %v536
    %642 = vmatprep.subr.mxu0 0.0
    %643 = vmatpush1.msra.mxu0 %v535
    %644 = vmatprep.subr.mxu0 0.0
    %645 = vmatpush2.msra.mxu0 0.0
    %646 = vmatprep.subr.mxu0 0.0
    %647 = vmatpush2.msra.mxu0 0.0
    %648 = vmatprep.subr.mxu0 0.0
    %649 = vmatpush2.msra.mxu0 0.0
    %650 = vmatprep.subr.mxu0 0.0
    %651 = vmatpush2.msra.mxu0 0.0
    %652 = vmatprep.subr.mxu0 0.0
    %653 = vmatpush2.msra.mxu0 0.0
    %654 = vmatprep.subr.mxu0 0.0
    %655 = vmatpush2.msra.mxu0 0.0
    %656 = vmatprep.subr.mxu0 0.0
    %657 = vmatpush2.msra.mxu0 0.0
    %658 = vmatprep.subr.mxu0 0.0
    %659 = vmatpush2.msra.mxu0 0.0
    %660 = vmatprep.subr.mxu0 0.0
    %661 = vmatpush2.msra.mxu0 0.0
    %662 = vmatprep.subr.mxu0 0.0
    %663 = vmatpush2.msra.mxu0 0.0
    %664 = vmatprep.subr.mxu0 0.0
    %665 = vmatpush2.msra.mxu0 0.0
    %666 = vmatprep.subr.mxu0 0.0
    %667 = vmatpush2.msra.mxu0 0.0
    %668 = vmatprep.subr.mxu0 0.0
    %669 = vmatpush2.msra.mxu0 0.0
    %670 = vmatprep.subr.mxu0 0.0
    %671 = vmatpush2.msra.mxu0 0.0
    %672 = vmatprep.subr.mxu0 0.0
    %673 = vmatpush2.msra.mxu0 0.0
    %674 = vmatprep.subr.mxu0 0.0
    %675 = vmatpush2.msra.mxu0 0.0
    %676 = vmatprep.mubr.f32.mxu0 0.0
    %677 = vmatmul.mubr.f32.gmra.mxu0 %v279
    %v678 = vpop.f32.mrf.mxu0
    %v679 = vadd.f32 0.0, %v678
    %v680 = vpop.f32.mrf.mxu0
    %681 = vmatprep.mubr.f32.mxu0 0.0
    %682 = vmatmul.mubr.f32.gmra.mxu0 %v282
    %v683 = vpop.f32.mrf.mxu0
    %v684 = vadd.f32 0.0, %v683
    %v685 = vpop.f32.mrf.mxu0
    %686 = vdwg.mxu0
    %v687 = vmul.f32 %v83, %v604
    %v688 = vmul.f32 %v84, %v609
    %v689 = vmul.f32 %v85, %v679
    %v690 = vmul.f32 %v86, %v684
    %v691 = vlaneseq
    %v692 = vshrl.u32 %v691, 7
    %v693 = vsub.s32 0, %v692
    %v694 = vrot.slane %v90, %v693
    %v695 = vadd.f32 %v687, %v694
    %v696 = vadd.f32 %v688, %v694
    %v697 = vadd.f32 %v689, %v694
    %v698 = vadd.f32 %v690, %v694
    %v699 = vmax.f32 %v695, 0.0
    %v700 = vmax.f32 %v696, 0.0
    %v701 = vmax.f32 %v697, 0.0
    %v702 = vmax.f32 %v698, 0.0
    %v703 = vsel %vm375, %v699, 0.0
    %v704 = vsel %vm375, %v700, 0.0
    %v705 = vadd.f32 %v703, %v704
    %v706 = vsel %vm375, %v701, 0.0
    %v707 = vadd.f32 %v705, %v706
    %v708 = vsel %vm375, %v702, 0.0
    %v709 = vadd.f32 %v707, %v708
    %v710 = vrot.slane %v709, 4
    %v711 = vadd.f32 %v709, %v710
    %v712 = vrot.slane %v711, 2
    %v713 = vadd.f32 %v711, %v712
    %v714 = vrot.slane %v713, 1
    %v715 = vadd.f32 %v713, %v714
    %v716 = vmul.f32 %v699, %v699
    %v717 = vmul.f32 %v700, %v700
    %v718 = vmul.f32 %v701, %v701
    %v719 = vmul.f32 %v702, %v702
    %v720 = vsel %vm375, %v716, 0.0
    %v721 = vsel %vm375, %v717, 0.0
    %v722 = vadd.f32 %v720, %v721
    %v723 = vsel %vm375, %v718, 0.0
    %v724 = vadd.f32 %v722, %v723
    %v725 = vsel %vm375, %v719, 0.0
    %v726 = vadd.f32 %v724, %v725
    %v727 = vrot.slane %v726, 4
    %v728 = vadd.f32 %v726, %v727
    %v729 = vrot.slane %v728, 2
    %v730 = vadd.f32 %v728, %v729
    %v731 = vrot.slane %v730, 1
    %v732 = vadd.f32 %v730, %v731
    %v733 = vmul.f32 %v715, 0.03125
    %v734 = vmul.f32 %v732, 0.03125
    %v735 = vmul.f32 %v733, %v733
    %v736 = vsub.f32 %v734, %v735
    %v737 = vmax.f32 %v736, 0.0
    %v738 = vadd.f32 %v737, 1e-05
    %v739 = vrsqrt.pop %v738
    %v740 = vmul.f32 %v91, %v739
    %v741 = vmul.f32 %v733, %v740
    %v742 = vsub.f32 %v92, %v741
    %v743 = vlaneseq
    %v744 = vshrl.u32 %v743, 7
    %v745 = vsub.s32 0, %v744
    %v746 = vrot.slane %v740, %v745
    %v747 = vmul.f32 %v699, %v746
    %v748 = vmul.f32 %v700, %v746
    %v749 = vmul.f32 %v701, %v746
    %v750 = vmul.f32 %v702, %v746
    %v751 = vlaneseq
    %v752 = vshrl.u32 %v751, 7
    %v753 = vsub.s32 0, %v752
    %v754 = vrot.slane %v742, %v753
    %v755 = vadd.f32 %v747, %v754
    %v756 = vadd.f32 %v748, %v754
    %v757 = vadd.f32 %v749, %v754
    %v758 = vadd.f32 %v750, %v754
    %v759 = vld [vmem:[#allocation2] sm:$0xff]
    %v760 = vld [vmem:[#allocation2 + $0x8] sm:$0xff]
    %v761 = vld [vmem:[#allocation2 + $0x10] sm:$0xff]
    %v762 = vld [vmem:[#allocation2 + $0x18] sm:$0xff]
    %v764 = vsel %vm375, %v755, 0
    %v767 = vsel %vm375, %v756, 0
    %v770 = vsel %vm375, %v757, 0
    %v773 = vsel %vm375, %v758, 0
    %775 = vmatprep.subr.mxu0 0.0
    %776 = vmatpush1.msra.mxu0 0.0
    %777 = vmatprep.subr.mxu0 0.0
    %778 = vmatpush1.msra.mxu0 0.0
    %779 = vmatprep.subr.mxu0 0.0
    %780 = vmatpush1.msra.mxu0 0.0
    %781 = vmatprep.subr.mxu0 0.0
    %782 = vmatpush1.msra.mxu0 0.0
    %783 = vmatprep.subr.mxu0 0.0
    %784 = vmatpush1.msra.mxu0 0.0
    %785 = vmatprep.subr.mxu0 0.0
    %786 = vmatpush1.msra.mxu0 0.0
    %787 = vmatprep.subr.mxu0 0.0
    %788 = vmatpush1.msra.mxu0 0.0
    %789 = vmatprep.subr.mxu0 0.0
    %790 = vmatpush1.msra.mxu0 0.0
    %791 = vmatprep.subr.mxu0 0.0
    %792 = vmatpush1.msra.mxu0 0.0
    %793 = vmatprep.subr.mxu0 0.0
    %794 = vmatpush1.msra.mxu0 0.0
    %795 = vmatprep.subr.mxu0 0.0
    %796 = vmatpush1.msra.mxu0 0.0
    %797 = vmatprep.subr.mxu0 0.0
    %798 = vmatpush1.msra.mxu0 0.0
    %799 = vmatprep.subr.mxu0 0.0
    %800 = vmatpush1.msra.mxu0 %v762
    %801 = vmatprep.subr.mxu0 0.0
    %802 = vmatpush1.msra.mxu0 %v761
    %803 = vmatprep.subr.mxu0 0.0
    %804 = vmatpush1.msra.mxu0 %v760
    %805 = vmatprep.subr.mxu0 0.0
    %806 = vmatpush1.msra.mxu0 %v759
    %807 = vmatprep.subr.mxu0 0.0
    %808 = vmatpush2.msra.mxu0 0.0
    %809 = vmatprep.subr.mxu0 0.0
    %810 = vmatpush2.msra.mxu0 0.0
    %811 = vmatprep.subr.mxu0 0.0
    %812 = vmatpush2.msra.mxu0 0.0
    %813 = vmatprep.subr.mxu0 0.0
    %814 = vmatpush2.msra.mxu0 0.0
    %815 = vmatprep.subr.mxu0 0.0
    %816 = vmatpush2.msra.mxu0 0.0
    %817 = vmatprep.subr.mxu0 0.0
    %818 = vmatpush2.msra.mxu0 0.0
    %819 = vmatprep.subr.mxu0 0.0
    %820 = vmatpush2.msra.mxu0 0.0
    %821 = vmatprep.subr.mxu0 0.0
    %822 = vmatpush2.msra.mxu0 0.0
    %823 = vmatprep.subr.mxu0 0.0
    %824 = vmatpush2.msra.mxu0 0.0
    %825 = vmatprep.subr.mxu0 0.0
    %826 = vmatpush2.msra.mxu0 0.0
    %827 = vmatprep.subr.mxu0 0.0
    %828 = vmatpush2.msra.mxu0 0.0
    %829 = vmatprep.subr.mxu0 0.0
    %830 = vmatpush2.msra.mxu0 0.0
    %831 = vmatprep.subr.mxu0 0.0
    %832 = vmatpush2.msra.mxu0 0.0
    %833 = vmatprep.subr.mxu0 0.0
    %834 = vmatpush2.msra.mxu0 0.0
    %835 = vmatprep.subr.mxu0 0.0
    %836 = vmatpush2.msra.mxu0 0.0
    %837 = vmatprep.subr.mxu0 0.0
    %838 = vmatpush2.msra.mxu0 0.0
    %839 = vmatprep.mubr.f32.mxu0 0.0
    %840 = vmatmul.mubr.f32.gmra.mxu0 %v764
    %v841 = vpop.f32.mrf.mxu0
    %v842 = vadd.f32 0.0, %v841
    %v843 = vpop.f32.mrf.mxu0
    %844 = vmatprep.mubr.f32.mxu0 0.0
    %845 = vmatmul.mubr.f32.gmra.mxu0 %v767
    %v846 = vpop.f32.mrf.mxu0
    %v847 = vadd.f32 0.0, %v846
    %v848 = vpop.f32.mrf.mxu0
    %849 = vmatprep.mubr.f32.mxu0 0.0
    %850 = vmatmul.mubr.f32.gmra.mxu0 %v770
    %v851 = vpop.f32.mrf.mxu0
    %v852 = vadd.f32 0.0, %v851
    %v853 = vpop.f32.mrf.mxu0
    %854 = vmatprep.mubr.f32.mxu0 0.0
    %855 = vmatmul.mubr.f32.gmra.mxu0 %v773
    %v856 = vpop.f32.mrf.mxu0
    %v857 = vadd.f32 0.0, %v856
    %v858 = vpop.f32.mrf.mxu0
    %859 = vdwg.mxu0
    %v860 = vmul.f32 %v83, %v842
    %v861 = vmul.f32 %v84, %v847
    %v862 = vmul.f32 %v85, %v852
    %v863 = vmul.f32 %v86, %v857
    %864 = vmatprep.subr.mxu0 0.0
    %865 = vmatpush1.msra.mxu0 0.0
    %866 = vmatprep.subr.mxu0 0.0
    %867 = vmatpush1.msra.mxu0 0.0
    %868 = vmatprep.subr.mxu0 0.0
    %869 = vmatpush1.msra.mxu0 0.0
    %870 = vmatprep.subr.mxu0 0.0
    %871 = vmatpush1.msra.mxu0 0.0
    %872 = vmatprep.subr.mxu0 0.0
    %873 = vmatpush1.msra.mxu0 0.0
    %874 = vmatprep.subr.mxu0 0.0
    %875 = vmatpush1.msra.mxu0 0.0
    %876 = vmatprep.subr.mxu0 0.0
    %877 = vmatpush1.msra.mxu0 0.0
    %878 = vmatprep.subr.mxu0 0.0
    %879 = vmatpush1.msra.mxu0 0.0
    %880 = vmatprep.subr.mxu0 0.0
    %881 = vmatpush1.msra.mxu0 0.0
    %882 = vmatprep.subr.mxu0 0.0
    %883 = vmatpush1.msra.mxu0 0.0
    %884 = vmatprep.subr.mxu0 0.0
    %885 = vmatpush1.msra.mxu0 0.0
    %886 = vmatprep.subr.mxu0 0.0
    %887 = vmatpush1.msra.mxu0 0.0
    %888 = vmatprep.subr.mxu0 0.0
    %889 = vmatpush1.msra.mxu0 0.0
    %890 = vmatprep.subr.mxu0 0.0
    %891 = vmatpush1.msra.mxu0 0.0
    %892 = vmatprep.subr.mxu0 0.0
    %893 = vmatpush1.msra.mxu0 %v861
    %894 = vmatprep.subr.mxu0 0.0
    %895 = vmatpush1.msra.mxu0 %v860
    %896 = vmatprep.subr.mxu0 0.0
    %897 = vmatpush2.msra.mxu0 0.0
    %898 = vmatprep.subr.mxu0 0.0
    %899 = vmatpush2.msra.mxu0 0.0
    %900 = vmatprep.subr.mxu0 0.0
    %901 = vmatpush2.msra.mxu0 0.0
    %902 = vmatprep.subr.mxu0 0.0
    %903 = vmatpush2.msra.mxu0 0.0
    %904 = vmatprep.subr.mxu0 0.0
    %905 = vmatpush2.msra.mxu0 0.0
    %906 = vmatprep.subr.mxu0 0.0
    %907 = vmatpush2.msra.mxu0 0.0
    %908 = vmatprep.subr.mxu0 0.0
    %909 = vmatpush2.msra.mxu0 0.0
    %910 = vmatprep.subr.mxu0 0.0
    %911 = vmatpush2.msra.mxu0 0.0
    %912 = vmatprep.subr.mxu0 0.0
    %913 = vmatpush2.msra.mxu0 0.0
    %914 = vmatprep.subr.mxu0 0.0
    %915 = vmatpush2.msra.mxu0 0.0
    %916 = vmatprep.subr.mxu0 0.0
    %917 = vmatpush2.msra.mxu0 0.0
    %918 = vmatprep.subr.mxu0 0.0
    %919 = vmatpush2.msra.mxu0 0.0
    %920 = vmatprep.subr.mxu0 0.0
    %921 = vmatpush2.msra.mxu0 0.0
    %922 = vmatprep.subr.mxu0 0.0
    %923 = vmatpush2.msra.mxu0 0.0
    %924 = vmatprep.subr.mxu0 0.0
    %925 = vmatpush2.msra.mxu0 0.0
    %926 = vmatprep.subr.mxu0 0.0
    %927 = vmatpush2.msra.mxu0 0.0
    %928 = vmatprep.mubr.f32.mxu0 0.0
    %929 = vmatmul.mubr.f32.gmra.mxu0 %v198
    %v930 = vpop.f32.mrf.mxu0
    %v931 = vadd.f32 0.0, %v930
    %v932 = vpop.f32.mrf.mxu0
    %933 = vmatprep.mubr.f32.mxu0 0.0
    %934 = vmatmul.mubr.f32.gmra.mxu0 %v201
    %v935 = vpop.f32.mrf.mxu0
    %v936 = vadd.f32 0.0, %v935
    %v937 = vpop.f32.mrf.mxu0
    %938 = vdwg.mxu0
    %939 = vmatprep.subr.mxu0 0.0
    %940 = vmatpush1.msra.mxu0 0.0
    %941 = vmatprep.subr.mxu0 0.0
    %942 = vmatpush1.msra.mxu0 0.0
    %943 = vmatprep.subr.mxu0 0.0
    %944 = vmatpush1.msra.mxu0 0.0
    %945 = vmatprep.subr.mxu0 0.0
    %946 = vmatpush1.msra.mxu0 0.0
    %947 = vmatprep.subr.mxu0 0.0
    %948 = vmatpush1.msra.mxu0 0.0
    %949 = vmatprep.subr.mxu0 0.0
    %950 = vmatpush1.msra.mxu0 0.0
    %951 = vmatprep.subr.mxu0 0.0
    %952 = vmatpush1.msra.mxu0 0.0
    %953 = vmatprep.subr.mxu0 0.0
    %954 = vmatpush1.msra.mxu0 0.0
    %955 = vmatprep.subr.mxu0 0.0
    %956 = vmatpush1.msra.mxu0 0.0
    %957 = vmatprep.subr.mxu0 0.0
    %958 = vmatpush1.msra.mxu0 0.0
    %959 = vmatprep.subr.mxu0 0.0
    %960 = vmatpush1.msra.mxu0 0.0
    %961 = vmatprep.subr.mxu0 0.0
    %962 = vmatpush1.msra.mxu0 0.0
    %963 = vmatprep.subr.mxu0 0.0
    %964 = vmatpush1.msra.mxu0 0.0
    %965 = vmatprep.subr.mxu0 0.0
    %966 = vmatpush1.msra.mxu0 0.0
    %967 = vmatprep.subr.mxu0 0.0
    %968 = vmatpush1.msra.mxu0 %v863
    %969 = vmatprep.subr.mxu0 0.0
    %970 = vmatpush1.msra.mxu0 %v862
    %971 = vmatprep.subr.mxu0 0.0
    %972 = vmatpush2.msra.mxu0 0.0
    %973 = vmatprep.subr.mxu0 0.0
    %974 = vmatpush2.msra.mxu0 0.0
    %975 = vmatprep.subr.mxu0 0.0
    %976 = vmatpush2.msra.mxu0 0.0
    %977 = vmatprep.subr.mxu0 0.0
    %978 = vmatpush2.msra.mxu0 0.0
    %979 = vmatprep.subr.mxu0 0.0
    %980 = vmatpush2.msra.mxu0 0.0
    %981 = vmatprep.subr.mxu0 0.0
    %982 = vmatpush2.msra.mxu0 0.0
    %983 = vmatprep.subr.mxu0 0.0
    %984 = vmatpush2.msra.mxu0 0.0
    %985 = vmatprep.subr.mxu0 0.0
    %986 = vmatpush2.msra.mxu0 0.0
    %987 = vmatprep.subr.mxu0 0.0
    %988 = vmatpush2.msra.mxu0 0.0
    %989 = vmatprep.subr.mxu0 0.0
    %990 = vmatpush2.msra.mxu0 0.0
    %991 = vmatprep.subr.mxu0 0.0
    %992 = vmatpush2.msra.mxu0 0.0
    %993 = vmatprep.subr.mxu0 0.0
    %994 = vmatpush2.msra.mxu0 0.0
    %995 = vmatprep.subr.mxu0 0.0
    %996 = vmatpush2.msra.mxu0 0.0
    %997 = vmatprep.subr.mxu0 0.0
    %998 = vmatpush2.msra.mxu0 0.0
    %999 = vmatprep.subr.mxu0 0.0
    %1000 = vmatpush2.msra.mxu0 0.0
    %1001 = vmatprep.subr.mxu0 0.0
    %1002 = vmatpush2.msra.mxu0 0.0
    %1003 = vmatprep.mubr.f32.mxu0 0.0
    %1004 = vmatmul.mubr.f32.gmra.mxu0 %v279
    %v1005 = vpop.f32.mrf.mxu0
    %v1006 = vadd.f32 0.0, %v1005
    %v1007 = vpop.f32.mrf.mxu0
    %1008 = vmatprep.mubr.f32.mxu0 0.0
    %1009 = vmatmul.mubr.f32.gmra.mxu0 %v282
    %v1010 = vpop.f32.mrf.mxu0
    %v1011 = vadd.f32 0.0, %v1010
    %v1012 = vpop.f32.mrf.mxu0
    %1013 = vdwg.mxu0
    %v1014 = vmul.f32 %v83, %v931
    %v1015 = vmul.f32 %v84, %v936
    %v1016 = vmul.f32 %v85, %v1006
    %v1017 = vmul.f32 %v86, %v1011
    %v1018 = vlaneseq
    %v1019 = vshrl.u32 %v1018, 7
    %v1020 = vsub.s32 0, %v1019
    %v1021 = vrot.slane %v93, %v1020
    %v1022 = vadd.f32 %v1014, %v1021
    %v1023 = vadd.f32 %v1015, %v1021
    %v1024 = vadd.f32 %v1016, %v1021
    %v1025 = vadd.f32 %v1017, %v1021
    %v1026 = vld [vmem:[%s5] sm:$0xff]
    %v1027 = vld [vmem:[%s5 + $0x8] sm:$0xff]
    %v1028 = vld [vmem:[%s5 + $0x10] sm:$0xff]
    %v1029 = vld [vmem:[%s5 + $0x18] sm:$0xff]
    %v1030 = vld [vmem:[%s7] sm:$0x1]
    %v1032 = vlaneseq
    %v1033 = vshrl.u32 %v1032, 7
    %v1034 = vsub.s32 0, %v1033
    %v1035 = vrot.slane %v1030, %v1034
    %v1038 = vsel %vm375, %v1022, 0
    %v1041 = vsel %vm375, %v1023, 0
    %v1044 = vsel %vm375, %v1024, 0
    %v1047 = vsel %vm375, %v1025, 0
    %1049 = vmatprep.subr.mxu0 0.0
    %1050 = vmatpush1.msra.mxu0 0.0
    %1051 = vmatprep.subr.mxu0 0.0
    %1052 = vmatpush1.msra.mxu0 0.0
    %1053 = vmatprep.subr.mxu0 0.0
    %1054 = vmatpush1.msra.mxu0 0.0
    %1055 = vmatprep.subr.mxu0 0.0
    %1056 = vmatpush1.msra.mxu0 0.0
    %1057 = vmatprep.subr.mxu0 0.0
    %1058 = vmatpush1.msra.mxu0 0.0
    %1059 = vmatprep.subr.mxu0 0.0
    %1060 = vmatpush1.msra.mxu0 0.0
    %1061 = vmatprep.subr.mxu0 0.0
    %1062 = vmatpush1.msra.mxu0 0.0
    %1063 = vmatprep.subr.mxu0 0.0
    %1064 = vmatpush1.msra.mxu0 0.0
    %1065 = vmatprep.subr.mxu0 0.0
    %1066 = vmatpush1.msra.mxu0 0.0
    %1067 = vmatprep.subr.mxu0 0.0
    %1068 = vmatpush1.msra.mxu0 0.0
    %1069 = vmatprep.subr.mxu0 0.0
    %1070 = vmatpush1.msra.mxu0 0.0
    %1071 = vmatprep.subr.mxu0 0.0
    %1072 = vmatpush1.msra.mxu0 0.0
    %1073 = vmatprep.subr.mxu0 0.0
    %1074 = vmatpush1.msra.mxu0 %v1029
    %1075 = vmatprep.subr.mxu0 0.0
    %1076 = vmatpush1.msra.mxu0 %v1028
    %1077 = vmatprep.subr.mxu0 0.0
    %1078 = vmatpush1.msra.mxu0 %v1027
    %1079 = vmatprep.subr.mxu0 0.0
    %1080 = vmatpush1.msra.mxu0 %v1026
    %1081 = vmatprep.subr.mxu0 0.0
    %1082 = vmatpush2.msra.mxu0 0.0
    %1083 = vmatprep.subr.mxu0 0.0
    %1084 = vmatpush2.msra.mxu0 0.0
    %1085 = vmatprep.subr.mxu0 0.0
    %1086 = vmatpush2.msra.mxu0 0.0
    %1087 = vmatprep.subr.mxu0 0.0
    %1088 = vmatpush2.msra.mxu0 0.0
    %1089 = vmatprep.subr.mxu0 0.0
    %1090 = vmatpush2.msra.mxu0 0.0
    %1091 = vmatprep.subr.mxu0 0.0
    %1092 = vmatpush2.msra.mxu0 0.0
    %1093 = vmatprep.subr.mxu0 0.0
    %1094 = vmatpush2.msra.mxu0 0.0
    %1095 = vmatprep.subr.mxu0 0.0
    %1096 = vmatpush2.msra.mxu0 0.0
    %1097 = vmatprep.subr.mxu0 0.0
    %1098 = vmatpush2.msra.mxu0 0.0
    %1099 = vmatprep.subr.mxu0 0.0
    %1100 = vmatpush2.msra.mxu0 0.0
    %1101 = vmatprep.subr.mxu0 0.0
    %1102 = vmatpush2.msra.mxu0 0.0
    %1103 = vmatprep.subr.mxu0 0.0
    %1104 = vmatpush2.msra.mxu0 0.0
    %1105 = vmatprep.subr.mxu0 0.0
    %1106 = vmatpush2.msra.mxu0 0.0
    %1107 = vmatprep.subr.mxu0 0.0
    %1108 = vmatpush2.msra.mxu0 0.0
    %1109 = vmatprep.subr.mxu0 0.0
    %1110 = vmatpush2.msra.mxu0 0.0
    %1111 = vmatprep.subr.mxu0 0.0
    %1112 = vmatpush2.msra.mxu0 0.0
    %1113 = vmatprep.mubr.f32.mxu0 0.0
    %1114 = vmatmul.mubr.f32.gmra.mxu0 %v1038
    %v1115 = vpop.f32.mrf.mxu0
    %v1116 = vadd.f32 %v1035, %v1115
    %v1117 = vpop.f32.mrf.mxu0
    %1118 = vmatprep.mubr.f32.mxu0 0.0
    %1119 = vmatmul.mubr.f32.gmra.mxu0 %v1041
    %v1120 = vpop.f32.mrf.mxu0
    %v1121 = vadd.f32 %v1035, %v1120
    %v1122 = vpop.f32.mrf.mxu0
    %1123 = vmatprep.mubr.f32.mxu0 0.0
    %1124 = vmatmul.mubr.f32.gmra.mxu0 %v1044
    %v1125 = vpop.f32.mrf.mxu0
    %v1126 = vadd.f32 %v1035, %v1125
    %v1127 = vpop.f32.mrf.mxu0
    %1128 = vmatprep.mubr.f32.mxu0 0.0
    %1129 = vmatmul.mubr.f32.gmra.mxu0 %v1047
    %v1130 = vpop.f32.mrf.mxu0
    %v1131 = vadd.f32 %v1035, %v1130
    %v1132 = vpop.f32.mrf.mxu0
    %1133 = vdwg.mxu0
    %1134 = vst.msk [vmem:[%s8] sm:$0xff] %vm95, %v1116
    %1135 = vst.msk [vmem:[%s8 + $0x8] sm:$0xff] %vm95, %v1121
    %1136 = vst.msk [vmem:[%s8 + $0x10] sm:$0xff] %vm95, %v1126
    %1137 = vst.msk [vmem:[%s8 + $0x18] sm:$0xff] %vm95, %v1131
    // Predicated region
    $region38: #{tpu_custom_call.1} parent=1 // pred_check
      _
    $region39: #{tpu_custom_call.1} parent=1 // pred_check_branch
      %1139 = sbr.rel (0) target = $region41
    $region40: #{tpu_custom_call.1} parent=1 // pred_region
      _
    $region41: #{tpu_custom_call.1} parent=1 // pred_fallthru
      _
    // Predicated region
    $region42: #{tpu_custom_call.1} parent=1 // pred_check
      _
    $region43: #{tpu_custom_call.1} parent=1 // pred_check_branch
      %1141 = sbr.rel (0) target = $region45
    $region44: #{tpu_custom_call.1} parent=1 // pred_region
      _
    $region45: #{tpu_custom_call.1} parent=1 // pred_fallthru
      _
    %1142 = vsyncpa [#allocation3], 1

</llo_original>
